<compile_context>
chip_gen: v7x
topology: tpu7x:2x2x1
jax: 0.10.0
libtpu: 0.0.40
codegen_flags: <defaults>
</compile_context>

<pallas_src>
import functools

import jax
import jax.numpy as jnp
from jax.experimental import pallas as pl
from jax.experimental.pallas import tpu as pltpu


def _gap_gate_kernel(w_ref, b_ref, x_ref, gate_ref, acc_ref, *,
                     kernel_size, guard, inv_hw):
    """Pass 1: global average pool + 1-D channel conv + sigmoid -> gate.

    w_ref:    SMEM (K,)  conv taps
    b_ref:    SMEM (1,)  conv bias
    x_ref:    VMEM (1, C, S) spatial tile of the flattened input
    gate_ref: VMEM (1, C, 1) per-channel gate (written at last spatial step)
    acc_ref:  VMEM (1, C + 2*guard, 1) f32 pooled-sum accumulator; guard rows
              stay zero and provide the Conv1d zero padding.
    """
    C = x_ref.shape[1]
    K = kernel_size
    pad = (K - 1) // 2
    si = pl.program_id(1)

    @pl.when(si == 0)
    def _init():
        acc_ref[...] = jnp.zeros_like(acc_ref)

    # Partial spatial sum for this tile; accumulate in f32 (channels stay on
    # sublanes -> the pass-2 broadcast along lanes is free).
    psum = jnp.sum(x_ref[...].astype(jnp.float32), axis=2, keepdims=True)
    acc_ref[:, guard:guard + C, :] = acc_ref[:, guard:guard + C, :] + psum

    @pl.when(si == pl.num_programs(1) - 1)
    def _finalize():
        # K-tap conv along channels as K statically shifted slices of the
        # zero-guarded accumulator (matches PyTorch Conv1d cross-correlation
        # with zero padding), then bias + sigmoid.
        s = jnp.zeros((1, C, 1), jnp.float32)
        for k in range(K):
            off = guard + k - pad
            s = s + w_ref[k] * acc_ref[:, off:off + C, :]
        gate_ref[...] = jax.nn.sigmoid(s * inv_hw + b_ref[0])


def _apply_gate_kernel(gate_ref, x_ref, o_ref):
    """Pass 2: per-channel rescale in the input's native dtype."""
    g = gate_ref[...]                          # (1, C, 1) float32
    x = x_ref[...]                             # (1, C, S) native dtype
    o_ref[...] = (x * g.astype(x.dtype)).astype(o_ref.dtype)


def _pick_spatial_tile(hw):
    """Largest lane-dense tile that evenly divides the flattened spatial dim."""
    if hw <= 1024:
        return hw                              # single full-width tile (always legal)
    for t in (1024, 512, 256, 128):
        if hw % t == 0:
            return t
    return hw  # TODO(synk): pad odd, very large H*W to a multiple of 128 instead.


def eca_forward(x, conv_w, conv_b):
    """x: (B, C, H, W); conv_w: (K,); conv_b: (1,). Matches the PyTorch ECA."""
    B, C, H, W = x.shape
    hw = H * W
    s_tile = _pick_spatial_tile(hw)
    n_sp = hw // s_tile

    x_flat = x.reshape(B, C, hw)               # lane-dense last dim

    K = int(conv_w.shape[0])
    pad = (K - 1) // 2
    guard = max(8, ((pad + 7) // 8) * 8)       # sublane-aligned zero guard band

    gap_kernel = functools.partial(
        _gap_gate_kernel, kernel_size=K, guard=guard, inv_hw=1.0 / float(hw))

    gates = pl.pallas_call(
        gap_kernel,
        out_shape=jax.ShapeDtypeStruct((B, C, 1), jnp.float32),
        grid=(B, n_sp),
        in_specs=[
            pl.BlockSpec(memory_space=pltpu.MemorySpace.SMEM),    # conv taps
            pl.BlockSpec(memory_space=pltpu.MemorySpace.SMEM),    # conv bias
            pl.BlockSpec((1, C, s_tile), lambda b, s: (b, 0, s)),
        ],
        out_specs=pl.BlockSpec((1, C, 1), lambda b, s: (b, 0, 0)),
        scratch_shapes=[pltpu.VMEM((1, C + 2 * guard, 1), jnp.float32)],
        compiler_params=pltpu.CompilerParams(
            dimension_semantics=("parallel", "arbitrary"),
            vmem_limit_bytes=32 * 1024 * 1024),
    )(conv_w.astype(jnp.float32), conv_b.astype(jnp.float32), x_flat)

    out_flat = pl.pallas_call(
        _apply_gate_kernel,
        out_shape=jax.ShapeDtypeStruct((B, C, hw), x.dtype),
        grid=(B, n_sp),
        in_specs=[
            pl.BlockSpec((1, C, 1), lambda b, s: (b, 0, 0)),
            pl.BlockSpec((1, C, s_tile), lambda b, s: (b, 0, s)),
        ],
        out_specs=pl.BlockSpec((1, C, s_tile), lambda b, s: (b, 0, s)),
        compiler_params=pltpu.CompilerParams(
            dimension_semantics=("parallel", "parallel"),
            vmem_limit_bytes=32 * 1024 * 1024),
    )(gates, x_flat)

    return out_flat.reshape(B, C, H, W)


def eca_reference(x, conv_w, conv_b):
    """Pure-JAX reference matching the PyTorch module."""
    K = conv_w.shape[0]
    pad = (K - 1) // 2
    y = jnp.mean(x.astype(jnp.float32), axis=(2, 3))            # (B, C)
    yp = jnp.pad(y, ((0, 0), (pad, pad)))
    C = y.shape[1]
    conv = sum(conv_w[k] * yp[:, k:k + C] for k in range(K)) + conv_b[0]
    gate = jax.nn.sigmoid(conv)
    return (x * gate[:, :, None, None].astype(x.dtype)).astype(x.dtype)


if __name__ == "__main__":
    key = jax.random.PRNGKey(0)
    kx, kw, kb = jax.random.split(key, 3)

    B, C, H, W = 2, 4, 16, 16
    kernel_size = 3

    x = jax.random.normal(kx, (B, C, H, W), dtype=jnp.float32)
    # Deterministic synthetic Conv1d(1, 1, kernel_size) parameters.
    conv_w = jax.random.normal(kw, (kernel_size,), dtype=jnp.float32) * 0.5
    conv_b = jax.random.normal(kb, (1,), dtype=jnp.float32) * 0.1

    out = eca_forward(x, conv_w, conv_b)
    out = jax.block_until_ready(out)

    ref = eca_reference(x, conv_w, conv_b)
    assert out.shape == x.shape
    assert jnp.allclose(out, ref, atol=1e-5, rtol=1e-5), "mismatch vs reference"

    print("KERNEL_OK")
</pallas_src>

<mosaic_0001>
module attributes {stable_mosaic.version = 11 : i64} {
  func.func @_gap_gate_kernel(%arg0: i32, %arg1: i32, %arg2: memref<3xf32, #tpu.memory_space<smem>>, %arg3: memref<1xf32, #tpu.memory_space<smem>>, %arg4: memref<1x4x256xf32, #tpu.memory_space<vmem>>, %arg5: memref<1x4x1xf32, #tpu.memory_space<vmem>>, %arg6: memref<1x20x1xf32, #tpu.memory_space<vmem>>) attributes {dimension_semantics = [#tpu.dimension_semantics<parallel>, #tpu.dimension_semantics<arbitrary>], iteration_bounds = array<i64: 2, 1>, scalar_prefetch = 0 : i64, scratch_operands = 1 : i64, tpu.core_type = #tpu.core_type<tc>, window_params = [{transform_indices = @transform_0, window_bounds = array<i64: 3>}, {transform_indices = @transform_1, window_bounds = array<i64: 1>}, {transform_indices = @transform_2, window_bounds = array<i64: 1, 4, 256>}, {transform_indices = @transform_3, window_bounds = array<i64: 1, 4, 1>}]} {
    %c0_i32 = arith.constant 0 : i32
    %0 = arith.cmpi eq, %arg1, %c0_i32 : i32
    %1 = arith.extui %0 : i1 to i32
    %c0_i32_0 = arith.constant 0 : i32
    %2 = arith.cmpi ne, %1, %c0_i32_0 : i32
    scf.if %2 {
      %cst_10 = arith.constant 0.000000e+00 : f32
      %12 = vector.broadcast %cst_10 : f32 to vector<1x20x1xf32>
      %c0_11 = arith.constant 0 : index
      %c0_12 = arith.constant 0 : index
      %c0_13 = arith.constant 0 : index
      %13 = vector.load %arg6[%c0_11, %c0_12, %c0_13] : memref<1x20x1xf32, #tpu.memory_space<vmem>>, vector<1x20x1xf32>
      tpu.vector_store %arg6[%c0_11, %c0_12, %c0_13], %12 {strides = array<i32>} : memref<1x20x1xf32, #tpu.memory_space<vmem>>, vector<1x20x1xf32>,
    } else {
    }
    %c0 = arith.constant 0 : index
    %c0_1 = arith.constant 0 : index
    %c0_2 = arith.constant 0 : index
    %3 = vector.load %arg4[%c0, %c0_1, %c0_2] : memref<1x4x256xf32, #tpu.memory_space<vmem>>, vector<1x4x256xf32>
    %cst = arith.constant dense<0.000000e+00> : vector<1x4xf32>
    %4 = vector.multi_reduction <add>, %3, %cst [2] : vector<1x4x256xf32> to vector<1x4xf32>
    %5 = vector.shape_cast %4 : vector<1x4xf32> to vector<1x4x1xf32>
    %c0_3 = arith.constant 0 : index
    %c8 = arith.constant 8 : index
    %c0_4 = arith.constant 0 : index
    %6 = vector.load %arg6[%c0_3, %c8, %c0_4] : memref<1x20x1xf32, #tpu.memory_space<vmem>>, vector<1x4x1xf32>
    %7 = arith.addf %6, %5 : vector<1x4x1xf32>
    %c0_5 = arith.constant 0 : index
    %c8_6 = arith.constant 8 : index
    %c0_7 = arith.constant 0 : index
    %8 = vector.load %arg6[%c0_5, %c8_6, %c0_7] : memref<1x20x1xf32, #tpu.memory_space<vmem>>, vector<1x4x1xf32>
    tpu.vector_store %arg6[%c0_5, %c8_6, %c0_7], %7 {strides = array<i32>} : memref<1x20x1xf32, #tpu.memory_space<vmem>>, vector<1x4x1xf32>,
    %c0_i32_8 = arith.constant 0 : i32
    %9 = arith.cmpi eq, %arg1, %c0_i32_8 : i32
    %10 = arith.extui %9 : i1 to i32
    %c0_i32_9 = arith.constant 0 : i32
    %11 = arith.cmpi ne, %10, %c0_i32_9 : i32
    scf.if %11 {
      %cst_10 = arith.constant 0.000000e+00 : f32
      %12 = vector.broadcast %cst_10 : f32 to vector<1x4x1xf32>
      %c0_11 = arith.constant 0 : index
      %13 = memref.load %arg2[%c0_11] : memref<3xf32, #tpu.memory_space<smem>>
      %c0_12 = arith.constant 0 : index
      %c7 = arith.constant 7 : index
      %c0_13 = arith.constant 0 : index
      %14 = vector.load %arg6[%c0_12, %c7, %c0_13] : memref<1x20x1xf32, #tpu.memory_space<vmem>>, vector<1x4x1xf32>
      %15 = vector.broadcast %13 : f32 to vector<1x4x1xf32>
      %16 = arith.mulf %15, %14 : vector<1x4x1xf32>
      %17 = arith.addf %12, %16 : vector<1x4x1xf32>
      %c1 = arith.constant 1 : index
      %18 = memref.load %arg2[%c1] : memref<3xf32, #tpu.memory_space<smem>>
      %c0_14 = arith.constant 0 : index
      %c8_15 = arith.constant 8 : index
      %c0_16 = arith.constant 0 : index
      %19 = vector.load %arg6[%c0_14, %c8_15, %c0_16] : memref<1x20x1xf32, #tpu.memory_space<vmem>>, vector<1x4x1xf32>
      %20 = vector.broadcast %18 : f32 to vector<1x4x1xf32>
      %21 = arith.mulf %20, %19 : vector<1x4x1xf32>
      %22 = arith.addf %17, %21 : vector<1x4x1xf32>
      %c2 = arith.constant 2 : index
      %23 = memref.load %arg2[%c2] : memref<3xf32, #tpu.memory_space<smem>>
      %c0_17 = arith.constant 0 : index
      %c9 = arith.constant 9 : index
      %c0_18 = arith.constant 0 : index
      %24 = vector.load %arg6[%c0_17, %c9, %c0_18] : memref<1x20x1xf32, #tpu.memory_space<vmem>>, vector<1x4x1xf32>
      %25 = vector.broadcast %23 : f32 to vector<1x4x1xf32>
      %26 = arith.mulf %25, %24 : vector<1x4x1xf32>
      %27 = arith.addf %22, %26 : vector<1x4x1xf32>
      %cst_19 = arith.constant 3.906250e-03 : f32
      %28 = vector.broadcast %cst_19 : f32 to vector<1x4x1xf32>
      %29 = arith.mulf %27, %28 : vector<1x4x1xf32>
      %c0_20 = arith.constant 0 : index
      %30 = memref.load %arg3[%c0_20] : memref<1xf32, #tpu.memory_space<smem>>
      %31 = vector.broadcast %30 : f32 to vector<1x4x1xf32>
      %32 = arith.addf %29, %31 : vector<1x4x1xf32>
      %33 = arith.negf %32 : vector<1x4x1xf32>
      %34 = math.exp %33 : vector<1x4x1xf32>
      %cst_21 = arith.constant 1.000000e+00 : f32
      %35 = vector.broadcast %cst_21 : f32 to vector<1x4x1xf32>
      %36 = arith.addf %35, %34 : vector<1x4x1xf32>
      %37 = arith.divf %35, %36 : vector<1x4x1xf32>
      %c0_22 = arith.constant 0 : index
      %c0_23 = arith.constant 0 : index
      %c0_24 = arith.constant 0 : index
      %38 = vector.load %arg5[%c0_22, %c0_23, %c0_24] : memref<1x4x1xf32, #tpu.memory_space<vmem>>, vector<1x4x1xf32>
      tpu.vector_store %arg5[%c0_22, %c0_23, %c0_24], %37 {strides = array<i32>} : memref<1x4x1xf32, #tpu.memory_space<vmem>>, vector<1x4x1xf32>,
    } else {
    }
    return
  }
  func.func @transform_0(%arg0: i32, %arg1: i32) -> i32 {
    %c0_i32 = arith.constant 0 : i32
    %c0_i32_0 = arith.constant 0 : i32
    return %c0_i32 : i32
  }
  func.func @transform_1(%arg0: i32, %arg1: i32) -> i32 {
    %c0_i32 = arith.constant 0 : i32
    %c0_i32_0 = arith.constant 0 : i32
    return %c0_i32 : i32
  }
  func.func @transform_2(%arg0: i32, %arg1: i32) -> (i32, i32, i32) {
    %c0_i32 = arith.constant 0 : i32
    %c0_i32_0 = arith.constant 0 : i32
    return %arg0, %c0_i32, %arg1 : i32, i32, i32
  }
  func.func @transform_3(%arg0: i32, %arg1: i32) -> (i32, i32, i32) {
    %c0_i32 = arith.constant 0 : i32
    %c0_i32_0 = arith.constant 0 : i32
    %c0_i32_1 = arith.constant 0 : i32
    return %arg0, %c0_i32, %c0_i32_0 : i32, i32, i32
  }
}

</mosaic_0001>

<llo_original>
// kernel: tpu_custom_call.1
$region0: #{tpu_custom_call.1}
  #allocation0 [shape = 'u32[]', space=smem, size = 0x4, offset = 0x4, fixed_abs, tag = 'smem constant byte address 0x4 - core index']
  #allocation1 [shape = 'u32[144,128]{1,0:T(1,128)}', space=vmem, size = 0x12000, scoped, tag = 'internal scratch']
  #allocation2 [shape = 'f32[1,20,1]{2,1,0:T(8,128)}', space=vmem, size = 0x3000, scoped, tag = 'scratch operand']
  #allocation3 [shape = 'f32[1]{0:T(128)S(6)}', space=smem, size = 0x200, scoped, tag = 'scoped memory for tpu_custom_call.1']
  %s0 = inlined_call_operand.vmem [shape: f32[3], index: 0, kind: input, shape index: {}]
  %s1 = inlined_call_operand.<no memory space> [shape: f32[1], index: 1, kind: input, shape index: {}]
  %s2 = inlined_call_operand.hbm [shape: f32[2,4,256], index: 2, kind: input, shape index: {}]
  %s3 = inlined_call_operand.vmem [shape: f32[2,4,1], index: 3, kind: output, shape index: {}]
  %s4 = sld [smem:[#allocation0]]
  $region61: #{tpu_custom_call.1} parent=0
    _
  %s6 = ssub.s32 1, %s4
  %s7 = scalar_select 0, %s6, %s4
  %8 = sst [smem:[#allocation3]] %s1
  $region1: #{tpu_custom_call.1} parent=0
    #allocation4 [shape = 'u8[512]{0}', space=smem, size = 0x200, scoped, tag = 'input window, operand 0, single buffered']
    #allocation5 [shape = 's32[2]{0}', space=sflag, size = 0x8, scoped, tag = 'scoped memory for tpu_custom_call.1']
    #allocation6 [shape = 's32[2]{0}', space=sflag, size = 0x8, scoped, tag = 'scoped memory for tpu_custom_call.1']
    #allocation7 [shape = 'u8[8192]{0}', space=vmem, size = 0x2000, scoped, tag = 'input window, operand 2']
    %9 = vsyncpa [#allocation6], 0
    %10 = vsyncpa [#allocation5], 0
    %s11 = scalar_lea.sflag [#allocation5], 1
    %12 = vsyncpa %s11, 0
    loop: start=0, step=1, limit=4
    $region2: #{tpu_custom_call.1} parent=1 // loop_pre_header
      _
    $region3: #{tpu_custom_call.1} parent=1 // loop_header
      %s14 = sphi 0, %s18
      %p15 = scmp.ge.s32.totalorder %s14, 4
      %s21 = sphi 0, %s33
      %s22 = sphi 0, %s29
      %s23 = sphi 0, %s21
      %s24 = sphi 0, %s22
      %s25 = sphi 0, %s23
      %s26 = sphi 0, %s24
      %s34 = sphi 0, %s34
      %s36 = sphi 0, %s34
      %s37 = sphi 0, %s36
      %s51 = sphi 0, %s37
      %s55 = sphi 0, %s55
      %s57 = sphi 0, %s55
      %s58 = sphi 0, %s57
      %s72 = sphi 0, %s58
      %s80 = sphi 0, %s82
      %s83 = sphi 0, %s80
      %s84 = sphi 0, %s83
      %s100 = sphi 0, %s84
      %s106 = sphi 0, %s108
      %s109 = sphi 0, %s106
      %s110 = sphi 0, %s109
      %s126 = sphi 0, %s110
    $region4: #{tpu_custom_call.1} parent=1 // loop_header_branch
      %17 = sbr.rel (%p15) target = $region8
    $region5: #{tpu_custom_call.1} parent=1 // loop_body
      %s19 = ssub.s32 %s14, 1
      %s20 = ssub.s32 %s14, 2
      %s27 = sadd.s32 1, %s22
      %p28 = scmp.ge.s32.totalorder %s27, 1
      %s29 = scalar_select %p28, 0, %s27
      %s30 = sadd.s32 1, %s21
      %s31 = scalar_select %p28, %s30, %s21
      %p32 = scmp.ge.s32.totalorder %s31, 2
      %s33 = scalar_select %p32, 0, %s31
      %s35 = sadd.s32 %s34, 1
      %p38 = scmp.eq.s32.totalorder %s14, 1
      %p39 = scmp.ne.s32.totalorder %s34, %s36
      %p40 = scmp.eq.s32.totalorder %s14, 0
      %p41 = por %p39, %p40
      %p42 = scmp.ne.s32.totalorder %s34, %s36
      %p43 = scmp.eq.s32.totalorder %s19, 1
      %p44 = por %p42, %p43
      %p45 = scmp.ne.s32.totalorder %s36, %s37
      %p46 = scmp.eq.s32.totalorder %s19, 0
      %p47 = por %p45, %p46
      %p48 = scmp.ne.s32.totalorder %s36, %s37
      %p49 = scmp.eq.s32.totalorder %s20, 1
      %p50 = por %p48, %p49
      %p52 = scmp.ne.s32.totalorder %s37, %s51
      %p53 = scmp.eq.s32.totalorder %s20, 0
      %p54 = por %p52, %p53
      %s56 = sadd.s32 %s55, 1
      %p59 = scmp.eq.s32.totalorder %s14, 1
      %p60 = scmp.ne.s32.totalorder %s55, %s57
      %p61 = scmp.eq.s32.totalorder %s14, 0
      %p62 = por %p60, %p61
      %p63 = scmp.ne.s32.totalorder %s55, %s57
      %p64 = scmp.eq.s32.totalorder %s19, 1
      %p65 = por %p63, %p64
      %p66 = scmp.ne.s32.totalorder %s57, %s58
      %p67 = scmp.eq.s32.totalorder %s19, 0
      %p68 = por %p66, %p67
      %p69 = scmp.ne.s32.totalorder %s57, %s58
      %p70 = scmp.eq.s32.totalorder %s20, 1
      %p71 = por %p69, %p70
      %p73 = scmp.ne.s32.totalorder %s58, %s72
      %p74 = scmp.eq.s32.totalorder %s20, 0
      %p75 = por %p73, %p74
      %s76 = ssub.s32 %s21, %s33
      %s77 = ssub.s32 %s22, %s29
      %s78 = sor.u32 %s76, %s77
      %p79 = scmp.eq.s32.totalorder %s78, 0
      %s81 = sadd.s32 %s80, 1
      %s82 = scalar_select %p79, %s80, %s81
      %p85 = pneg %p79
      %p86 = scmp.eq.s32.totalorder %s14, 1
      %p87 = por %p85, %p86
      %p88 = scmp.ne.s32.totalorder %s80, %s83
      %p89 = scmp.eq.s32.totalorder %s14, 0
      %p90 = por %p88, %p89
      %p91 = scmp.ne.s32.totalorder %s80, %s83
      %p92 = scmp.eq.s32.totalorder %s19, 1
      %p93 = por %p91, %p92
      %p94 = scmp.ne.s32.totalorder %s83, %s84
      %p95 = scmp.eq.s32.totalorder %s19, 0
      %p96 = por %p94, %p95
      %p97 = scmp.ne.s32.totalorder %s83, %s84
      %p98 = scmp.eq.s32.totalorder %s20, 1
      %p99 = por %p97, %p98
      %p101 = scmp.ne.s32.totalorder %s84, %s100
      %p102 = scmp.eq.s32.totalorder %s20, 0
      %p103 = por %p101, %p102
      %s104 = ssub.s32 %s21, %s33
      %p105 = scmp.eq.s32.totalorder %s104, 0
      %s107 = sadd.s32 %s106, 1
      %s108 = scalar_select %p105, %s106, %s107
      %p111 = pneg %p105
      %p112 = scmp.eq.s32.totalorder %s14, 1
      %p113 = por %p111, %p112
      %p114 = scmp.ne.s32.totalorder %s106, %s109
      %p115 = scmp.eq.s32.totalorder %s14, 0
      %p116 = por %p114, %p115
      %p117 = scmp.ne.s32.totalorder %s106, %s109
      %p118 = scmp.eq.s32.totalorder %s19, 1
      %p119 = por %p117, %p118
      %p120 = scmp.ne.s32.totalorder %s109, %s110
      %p121 = scmp.eq.s32.totalorder %s19, 0
      %p122 = por %p120, %p121
      %p123 = scmp.ne.s32.totalorder %s109, %s110
      %p124 = scmp.eq.s32.totalorder %s20, 1
      %p125 = por %p123, %p124
      %p127 = scmp.ne.s32.totalorder %s110, %s126
      %p128 = scmp.eq.s32.totalorder %s20, 0
      %p129 = por %p127, %p128
      %p130 = scmp.le.s32.totalorder 1, %s14
      %p131 = scmp.lt.s32.totalorder %s14, 3
      %p132 = pnand %p130, %p131
      %p133 = pneg %p132
      // Predicated region
      $region9: #{tpu_custom_call.1} parent=5 // pred_check
        _
      $region10: #{tpu_custom_call.1} parent=5 // pred_check_branch
        %135 = sbr.rel (%p132) target = $region12
      $region11: #{tpu_custom_call.1} parent=5 // pred_region
        %s136 = ssub.s32 %s14, 1
        // Predicated region
        $region13: #{tpu_custom_call.1} parent=11 // pred_check
          %p137 = pneg %p47
        $region14: #{tpu_custom_call.1} parent=11 // pred_check_branch
          %139 = sbr.rel (%p137) target = $region16
        $region15: #{tpu_custom_call.1} parent=11 // pred_region
          %s141 = ssub.s32 16, 16
          %142 = vsyncadd [#allocation6], %s141
          %s144 = sshll.u32 %s0, 4
          %s145 = int_to_ptr.vmem [resolvable:$true] %s144
          %147 = dma.vmem_to_smem %s145, 16, [#allocation4], [#allocation6]
        $region16: #{tpu_custom_call.1} parent=11 // pred_fallthru
          _
        // Predicated region
        $region17: #{tpu_custom_call.1} parent=11 // pred_check
          %p148 = pneg %p68
        $region18: #{tpu_custom_call.1} parent=11 // pred_check_branch
          %150 = sbr.rel (%p148) target = $region20
        $region19: #{tpu_custom_call.1} parent=11 // pred_region
          _
        $region20: #{tpu_custom_call.1} parent=11 // pred_fallthru
          _
      $region12: #{tpu_custom_call.1} parent=5 // pred_fallthru
        _
      %p151 = scmp.lt.s32.totalorder %s14, 2
      // Predicated region
      $region21: #{tpu_custom_call.1} parent=5 // pred_check
        %p152 = pneg %p151
      $region22: #{tpu_custom_call.1} parent=5 // pred_check_branch
        %154 = sbr.rel (%p152) target = $region24
      $region23: #{tpu_custom_call.1} parent=5 // pred_region
        // Predicated region
        $region25: #{tpu_custom_call.1} parent=23 // pred_check
          %p155 = pneg %p90
        $region26: #{tpu_custom_call.1} parent=23 // pred_check_branch
          %157 = sbr.rel (%p155) target = $region28
        $region27: #{tpu_custom_call.1} parent=23 // pred_region
          %s158 = sand.u32 %s80, 1
          %s159 = scalar_lea.sflag [#allocation5], %s158
          %s160 = sand.u32 %s80, 1
          %s161 = smul.addr %s160, 8
          %s162 = scalar_lea.vmem [#allocation7], %s161
          %s163 = smul.u32 2, %s22
          %s165 = ssub.s32 128, 128
          %166 = vsyncadd %s159, %s165
          %s167 = smul.addr %s21, 2
          %s168 = sadd.s32 %s163, %s167
          %s169 = smul.addr %s168, 64
          %s170 = scalar_lea.hbm %s2, %s169
          %s172 = sshll.u32 %s162, 4
          %s173 = int_to_ptr.vmem [resolvable:$true] %s172
          %175 = dma.hbm_to_vmem [thread:$0]  %s170, 128, %s173, %s159
        $region28: #{tpu_custom_call.1} parent=23 // pred_fallthru
          _
      $region24: #{tpu_custom_call.1} parent=5 // pred_fallthru
        _
      %p176 = scmp.le.s32.totalorder 1, %s14
      %p177 = scmp.lt.s32.totalorder %s14, 3
      %p178 = pnand %p176, %p177
      %p179 = pneg %p178
      // Predicated region
      $region29: #{tpu_custom_call.1} parent=5 // pred_check
        _
      $region30: #{tpu_custom_call.1} parent=5 // pred_check_branch
        %181 = sbr.rel (%p178) target = $region32
      $region31: #{tpu_custom_call.1} parent=5 // pred_region
        %s182 = ssub.s32 %s14, 1
        // Predicated region
        $region33: #{tpu_custom_call.1} parent=31 // pred_check
          %p183 = pneg %p47
        $region34: #{tpu_custom_call.1} parent=31 // pred_check_branch
          %185 = sbr.rel (%p183) target = $region36
        $region35: #{tpu_custom_call.1} parent=31 // pred_region
          %186 = dma.done [#allocation6], 16
        $region36: #{tpu_custom_call.1} parent=31 // pred_fallthru
          _
        %s187 = sand.u32 %s83, 1
        %s188 = scalar_lea.sflag [#allocation5], %s187
        %s189 = sand.u32 %s83, 1
        %s190 = smul.addr %s189, 8
        %s191 = scalar_lea.vmem [#allocation7], %s190
        // Predicated region
        $region37: #{tpu_custom_call.1} parent=31 // pred_check
          %p192 = pneg %p96
        $region38: #{tpu_custom_call.1} parent=31 // pred_check_branch
          %194 = sbr.rel (%p192) target = $region40
        $region39: #{tpu_custom_call.1} parent=31 // pred_region
          %195 = dma.done %s188, 128
        $region40: #{tpu_custom_call.1} parent=31 // pred_fallthru
          _
        %196 = sfence
        %p197 = pneg %p47
        %p198 = pneg %p44
        %p199 = pneg %p68
        %p200 = pneg %p65
        %s201 = sand.u32 %s83, 1
        %s202 = scalar_lea.sflag [#allocation5], %s201
        %s203 = sand.u32 %s83, 1
        %s204 = smul.addr %s203, 8
        %s205 = scalar_lea.vmem [#allocation7], %s204
        %p206 = pneg %p96
        %p207 = pneg %p93
        %p208 = pneg %p122
        %p209 = pneg %p119
        %p210 = scmp.lt.s32.totalorder %s23, 1
        %s211 = scalar_select %p210, %s23, 1
        %s212 = smul.addr %s211, 4
        %s213 = scalar_lea.vmem %s3, %s212
        %s214 = smul.u32 2, %s24
        %p215 = scmp.lt.s32.totalorder %s23, 1
        %s216 = scalar_select %p215, %s23, 1
        %s217 = smul.addr %s216, 4
        %s218 = scalar_lea.vmem %s3, %s217
        %p219 = scmp.eq.s32.totalorder %s24, 0
        // Predicated region
        $region41: #{tpu_custom_call.1} parent=31 // pred_check
          %p220 = pneg %p219
        $region42: #{tpu_custom_call.1} parent=31 // pred_check_branch
          %222 = sbr.rel (%p220) target = $region44
        $region43: #{tpu_custom_call.1} parent=31 // pred_region
          %vm223 = vcmask 7168
          %224 = vst.msk [vmem:[#allocation2] sm:$0xff] %vm223, 0.0
          %225 = vst.msk [vmem:[#allocation2 + $0x8] sm:$0xff] %vm223, 0.0
          %vm226 = vcmask 3072
          %227 = vst.msk [vmem:[#allocation2 + $0x10] sm:$0xf] %vm226, 0.0
        $region44: #{tpu_custom_call.1} parent=31 // pred_fallthru
          _
        %v228 = vld [vmem:[%s191] sm:$0xff]
        %v230 = vcombine.high %v228, %v228
        %vm232 = vcmask 1043456
        %v233 = vsel %vm232, %v228, 0.0
        %v234 = vsel %vm232, %v230, 0.0
        %v235 = vadd.f32 %v233, %v234
        %236 = vadd.xlane.f32.xlu0 %v235
        %v237 = vpop.xlane.xlu0 %236
        %v238 = vld [vmem:[#allocation2 + $0x8] sm:$0xf]
        %v239 = vadd.f32 %v238, %v237
        %vm240 = vcmask 3072
        %241 = vst.msk [vmem:[#allocation2 + $0x8] sm:$0xf] %vm240, %v239
        // Predicated region
        $region45: #{tpu_custom_call.1} parent=31 // pred_check
          %p242 = pneg %p219
        $region46: #{tpu_custom_call.1} parent=31 // pred_check_branch
          %244 = sbr.rel (%p242) target = $region48
        $region47: #{tpu_custom_call.1} parent=31 // pred_region
          %s245 = sld [smem:[#allocation4]]
          %v246 = vld [vmem:[#allocation2 + $0x7] sm:$0xf]
          %v247 = vstv %s245
          %v248 = vmul.f32 %v247, %v246
          %v249 = vadd.f32 %v248, 0.0
          %s250 = sld [smem:[#allocation4 + $0x1]]
          %v251 = vld [vmem:[#allocation2 + $0x8] sm:$0xf]
          %v252 = vstv %s250
          %v253 = vmul.f32 %v252, %v251
          %v254 = vadd.f32 %v249, %v253
          %s255 = sld [smem:[#allocation4 + $0x2]]
          %v256 = vld [vmem:[#allocation2 + $0x9] sm:$0xf]
          %v257 = vstv %s255
          %v258 = vmul.f32 %v257, %v256
          %v259 = vadd.f32 %v254, %v258
          %v260 = vmul.f32 %v259, 0.00390625
          %s261 = sld [smem:[#allocation3]]
          %v262 = vstv %s261
          %v263 = vadd.f32 %v260, %v262
          %v264 = vxor.u32 %v263, 2147483648
          %v265 = vmul.f32 %v264, 1.442695
          %v266 = vpow.pop %v265
          %v267 = vadd.f32 %v266, 1.0
          %v268 = vrcp.pop %v267
          %v269 = vmul.f32 1.0, %v268
          %270 = vst.msk [vmem:[%s218] sm:$0xf] %vm240, %v269
        $region48: #{tpu_custom_call.1} parent=31 // pred_fallthru
          _
        %p271 = scmp.lt.s32.totalorder %s23, 1
        %s272 = scalar_select %p271, %s23, 1
        %s273 = smul.addr %s272, 4
        %s274 = scalar_lea.vmem %s3, %s273
        // Predicated region
        $region49: #{tpu_custom_call.1} parent=31 // pred_check
          %p275 = pneg %p119
        $region50: #{tpu_custom_call.1} parent=31 // pred_check_branch
          %277 = sbr.rel (%p275) target = $region52
        $region51: #{tpu_custom_call.1} parent=31 // pred_region
          _
        $region52: #{tpu_custom_call.1} parent=31 // pred_fallthru
          _
      $region32: #{tpu_custom_call.1} parent=5 // pred_fallthru
        _
      %p278 = scmp.le.s32.totalorder 2, %s14
      // Predicated region
      $region53: #{tpu_custom_call.1} parent=5 // pred_check
        %p279 = pneg %p278
      $region54: #{tpu_custom_call.1} parent=5 // pred_check_branch
        %281 = sbr.rel (%p279) target = $region56
      $region55: #{tpu_custom_call.1} parent=5 // pred_region
        %s282 = ssub.s32 %s14, 2
        // Predicated region
        $region57: #{tpu_custom_call.1} parent=55 // pred_check
          %p283 = pneg %p125
        $region58: #{tpu_custom_call.1} parent=55 // pred_check_branch
          %285 = sbr.rel (%p283) target = $region60
        $region59: #{tpu_custom_call.1} parent=55 // pred_region
          %p286 = scmp.lt.s32.totalorder %s25, 1
          %s287 = scalar_select %p286, %s25, 1
          %s288 = smul.addr %s287, 4
          %s289 = scalar_lea.vmem %s3, %s288
        $region60: #{tpu_custom_call.1} parent=55 // pred_fallthru
          _
      $region56: #{tpu_custom_call.1} parent=5 // pred_fallthru
        _
    $region6: #{tpu_custom_call.1} parent=1 // loop_footer
      %s18 = sadd.s32 1, %s14
    $region7: #{tpu_custom_call.1} parent=1 // loop_footer_branch
      %13 = sbr.rel target = $region3
    $region8: #{tpu_custom_call.1} parent=1 // loop_exit
      _
    %290 = vsyncpa [#allocation5], 1
    %s291 = scalar_lea.sflag [#allocation5], 1
    %292 = vsyncpa %s291, 1
    %293 = vsyncpa [#allocation6], 1
    %s294 = scalar_lea.sflag [#allocation6], 1
    %295 = vsyncpa %s294, 1

</llo_original>
